<compile_context>
chip_gen: v5e
topology: v5e:2x2
jax: 0.10.0
libtpu: 0.0.40
codegen_flags: <defaults>
</compile_context>

<pallas_src>
import functools

import jax
import jax.numpy as jnp
from jax.experimental import pallas as pl
from jax.experimental.pallas import tpu as pltpu


# -----------------------------------------------------------------------------
# Pass 1: spatial sum of x -> folded spatial-attention weights (per batch).
# -----------------------------------------------------------------------------
def _spatial_stats_kernel(x_ref, wq_ref, bq_ref, wvT_ref, bv_ref,
                          weff_ref, beff_ref, acc_ref, *, inv_hw):
    t = pl.program_id(1)

    @pl.when(t == 0)
    def _():
        acc_ref[...] = jnp.zeros_like(acc_ref)

    # zero padding does not perturb the spatial sum
    acc_ref[...] += jnp.sum(x_ref[0].astype(jnp.float32), axis=-1, keepdims=True)

    @pl.when(t == pl.num_programs(1) - 1)
    def _():
        xbar = acc_ref[...] * inv_hw                                       # (C1, 1)
        q = jnp.dot(wq_ref[...], xbar,
                    preferred_element_type=jnp.float32) + bq_ref[...]      # (C2, 1)
        q = q - jnp.max(q, axis=0, keepdims=True)
        e = jnp.exp(q)
        q_soft = e / jnp.sum(e, axis=0, keepdims=True)                     # (C2, 1)
        weff_ref[0] = jnp.dot(wvT_ref[...], q_soft,
                              preferred_element_type=jnp.float32)          # (C1, 1)
        beff_ref[0] = jnp.sum(q_soft * bv_ref[...], axis=0, keepdims=True) # (1, 1)


# -----------------------------------------------------------------------------
# Pass 2: online softmax over HW of the channel-attention logits + p-weighted
#         spatial average of x; finalize -> per-batch channel weight * tanh(g).
# -----------------------------------------------------------------------------
def _channel_stats_kernel(x_ref, weff_ref, beff_ref, wqb_ref, mfold_ref,
                          bfold_ref, lng_ref, lnb_ref, tg_ref,
                          cw_ref, m_sc, l_sc, acc_sc, *, hw, tile, needs_mask):
    t = pl.program_id(1)

    @pl.when(t == 0)
    def _():
        m_sc[...] = jnp.full_like(m_sc, -jnp.inf)
        l_sc[...] = jnp.zeros_like(l_sc)
        acc_sc[...] = jnp.zeros_like(acc_sc)

    x = x_ref[0].astype(jnp.float32)                                       # (C1, T)
    attn = jnp.dot(weff_ref[0], x,
                   preferred_element_type=jnp.float32) + beff_ref[0]       # (1, T)
    sw = jnp.clip(attn * (1.0 / 6.0) + 0.5, 0.0, 1.0)                      # (1, T)
    # channel-attention logits; the constant query bias cancels in the softmax
    q = sw * jnp.dot(wqb_ref[...], x, preferred_element_type=jnp.float32)  # (1, T)

    if needs_mask:  # mask zero-padded spatial positions out of the HW softmax
        lane = jax.lax.broadcasted_iota(jnp.int32, (1, tile), 1) + t * tile
        q = jnp.where(lane < hw, q, -jnp.inf)

    m_prev = m_sc[...]
    m_new = jnp.maximum(m_prev, jnp.max(q, axis=-1, keepdims=True))        # (1, 1)
    alpha = jnp.exp(m_prev - m_new)
    p = jnp.exp(q - m_new)                                                 # (1, T)
    l_sc[...] = alpha * l_sc[...] + jnp.sum(p, axis=-1, keepdims=True)
    w = p * sw                                                             # (1, T)
    acc_sc[...] = alpha * acc_sc[...] + jnp.sum(x * w, axis=-1, keepdims=True)
    m_sc[...] = m_new

    @pl.when(t == pl.num_programs(1) - 1)
    def _():
        sbar = acc_sc[...] / l_sc[...]                                     # (C1, 1)
        o = jnp.dot(mfold_ref[...], sbar,
                    preferred_element_type=jnp.float32) + bfold_ref[...]   # (C, 1)
        mu = jnp.mean(o, axis=0, keepdims=True)
        var = jnp.mean((o - mu) ** 2, axis=0, keepdims=True)
        ln = (o - mu) * jax.lax.rsqrt(var + 1e-5) * lng_ref[...] + lnb_ref[...]
        cw = jnp.clip(ln * (1.0 / 6.0) + 0.5, 0.0, 1.0)                    # hardsigmoid
        cw_ref[0] = tg_ref[...] * cw                                       # tanh(gamma)*cw


# -----------------------------------------------------------------------------
# Pass 3: fully fused apply pass over lane-dense (C1, TILE) blocks of x.
# -----------------------------------------------------------------------------
def _apply_kernel(x_ref, weff_ref, beff_ref, cwg_ref, wb_ref, w1_ref, s1_ref,
                  w2_ref, afold_ref, wcv2b_ref, o_ref):
    f32 = jnp.float32
    x = x_ref[0].astype(f32)                                               # (C1, T)
    b = jnp.dot(wb_ref[...], x, preferred_element_type=f32)                # (C, T)
    attn = jnp.dot(weff_ref[0], x, preferred_element_type=f32) + beff_ref[0]
    sw = jnp.clip(attn * (1.0 / 6.0) + 0.5, 0.0, 1.0)                      # (1, T)
    # b2 = 2*b + tanh(gamma)*cw*sw*b   (both residual-PSA residuals folded)
    b2 = b * (2.0 + cwg_ref[0] * sw)                                       # (C, T)
    h = jnp.maximum(jnp.dot(w1_ref[...], b2, preferred_element_type=f32)
                    + s1_ref[...], 0.0)                                    # (2C, T)
    b3 = b2 + jnp.dot(w2_ref[...], h, preferred_element_type=f32)          # (C, T)
    out = (jnp.dot(afold_ref[...], x, preferred_element_type=f32)          # a-branch fold
           + jnp.dot(wcv2b_ref[...], b3, preferred_element_type=f32))      # (C1, T)
    o_ref[0] = out.astype(o_ref.dtype)


def psaffn_forward(x, p, *, tile_hw=512):
    """PSAFFN forward. x: (B, C1, H, W) f32/bf16. Returns same shape & dtype."""
    B, C1, H, W = x.shape
    C = p["Wf1"].shape[1]
    C2 = p["Wv_s"].shape[0]
    HW = H * W
    LANE = 128
    f32 = jnp.float32

    # lane-aligned spatial tiling; pad HW so every block store is lane-dense
    hw_lanes = ((HW + LANE - 1) // LANE) * LANE
    tile = min(int(tile_hw), hw_lanes)
    tile = max(LANE, (tile // LANE) * LANE)
    hw_pad = ((HW + tile - 1) // tile) * tile
    n_t = hw_pad // tile
    needs_mask = hw_pad != HW

    xf = x.reshape(B, C1, HW)
    if needs_mask:
        xf = jnp.pad(xf, ((0, 0), (0, 0), (0, hw_pad - HW)))

    # ---- static weight folds (tiny, once in the wrapper, kept in f32) ----
    Wcv1 = p["Wcv1"].astype(f32)
    Wa, Wb = Wcv1[:C], Wcv1[C:]                              # (C, C1) each
    Wcv2 = p["Wcv2"].astype(f32)
    A_fold = Wcv2[:, :C] @ Wa                                # (C1, C1): cv2∘cv1 on a
    Wcv2_b = Wcv2[:, C:]                                     # (C1, C)

    # spatial attention folded through Wb (reads x directly)
    Wq_s = p["Wq_s"].astype(f32) @ Wb                        # (C2, C1)
    WvT_s = (p["Wv_s"].astype(f32) @ Wb).T                   # (C1, C2)
    bq_s = p["bq_s"].reshape(C2, 1).astype(f32)
    bv_s = p["bv_s"].reshape(C2, 1).astype(f32)

    # channel attention folded through Wb
    wqb = (p["Wq_c"].astype(f32) @ Wb).reshape(1, C1)        # (1, C1)
    M_fold = p["Wo"].astype(f32) @ p["Wv_c"].astype(f32) @ Wb          # (C, C1)
    b_fold = (p["Wo"].astype(f32) @ p["bv_c"].reshape(C2, 1).astype(f32)
              + p["bo"].reshape(C, 1).astype(f32))                      # (C, 1)
    ln_g = p["ln_g"].reshape(C, 1).astype(f32)
    ln_b = p["ln_b"].reshape(C, 1).astype(f32)
    tg = jnp.tanh(p["gamma"]).reshape(1, 1).astype(f32)

    # FFN with eval-mode BatchNorm folded into the first conv
    bn_scale = p["bn_g"].astype(f32) * jax.lax.rsqrt(p["bn_rv"].astype(f32) + 1e-5)
    W1 = p["Wf1"].astype(f32) * bn_scale[:, None]            # (2C, C)
    s1 = (p["bn_b"].astype(f32) - p["bn_rm"].astype(f32) * bn_scale).reshape(2 * C, 1)
    W2 = p["Wf2"].astype(f32)                                # (C, 2C)

    # ---- Pass 1: spatial mean -> folded spatial attention weights ----
    w_eff_col, b_eff = pl.pallas_call(
        functools.partial(_spatial_stats_kernel, inv_hw=1.0 / float(HW)),
        out_shape=(jax.ShapeDtypeStruct((B, C1, 1), f32),
                   jax.ShapeDtypeStruct((B, 1, 1), f32)),
        grid_spec=pltpu.PrefetchScalarGridSpec(
            num_scalar_prefetch=0, grid=(B, n_t),
            in_specs=[
                pl.BlockSpec((1, C1, tile), lambda b, t: (b, 0, t)),
                pl.BlockSpec((C2, C1), lambda b, t: (0, 0)),
                pl.BlockSpec((C2, 1), lambda b, t: (0, 0)),
                pl.BlockSpec((C1, C2), lambda b, t: (0, 0)),
                pl.BlockSpec((C2, 1), lambda b, t: (0, 0)),
            ],
            out_specs=[
                pl.BlockSpec((1, C1, 1), lambda b, t: (b, 0, 0)),
                pl.BlockSpec((1, 1, 1), lambda b, t: (b, 0, 0)),
            ],
            scratch_shapes=[pltpu.VMEM((C1, 1), f32)]),
        compiler_params=pltpu.CompilerParams(
            dimension_semantics=("parallel", "arbitrary")),
    )(xf, Wq_s, bq_s, WvT_s, bv_s)

    w_eff_row = w_eff_col.reshape(B, 1, C1)  # contiguous -> free reshape

    # ---- Pass 2: HW softmax (online) -> channel weight (scaled by tanh(gamma)) ----
    cw_scaled = pl.pallas_call(
        functools.partial(_channel_stats_kernel, hw=HW, tile=tile,
                          needs_mask=needs_mask),
        out_shape=jax.ShapeDtypeStruct((B, C, 1), f32),
        grid_spec=pltpu.PrefetchScalarGridSpec(
            num_scalar_prefetch=0, grid=(B, n_t),
            in_specs=[
                pl.BlockSpec((1, C1, tile), lambda b, t: (b, 0, t)),
                pl.BlockSpec((1, 1, C1), lambda b, t: (b, 0, 0)),
                pl.BlockSpec((1, 1, 1), lambda b, t: (b, 0, 0)),
                pl.BlockSpec((1, C1), lambda b, t: (0, 0)),
                pl.BlockSpec((C, C1), lambda b, t: (0, 0)),
                pl.BlockSpec((C, 1), lambda b, t: (0, 0)),
                pl.BlockSpec((C, 1), lambda b, t: (0, 0)),
                pl.BlockSpec((C, 1), lambda b, t: (0, 0)),
                pl.BlockSpec((1, 1), lambda b, t: (0, 0)),
            ],
            out_specs=pl.BlockSpec((1, C, 1), lambda b, t: (b, 0, 0)),
            scratch_shapes=[pltpu.VMEM((1, 1), f32),
                            pltpu.VMEM((1, 1), f32),
                            pltpu.VMEM((C1, 1), f32)]),
        compiler_params=pltpu.CompilerParams(
            dimension_semantics=("parallel", "arbitrary")),
    )(xf, w_eff_row, b_eff, wqb, M_fold, b_fold, ln_g, ln_b, tg)

    # ---- Pass 3: fused apply (cv1 b-half, PSA scalings, FFN, residuals, cv2) ----
    out = pl.pallas_call(
        _apply_kernel,
        out_shape=jax.ShapeDtypeStruct((B, C1, hw_pad), x.dtype),
        grid_spec=pltpu.PrefetchScalarGridSpec(
            num_scalar_prefetch=0, grid=(B, n_t),
            in_specs=[
                pl.BlockSpec((1, C1, tile), lambda b, t: (b, 0, t)),
                pl.BlockSpec((1, 1, C1), lambda b, t: (b, 0, 0)),
                pl.BlockSpec((1, 1, 1), lambda b, t: (b, 0, 0)),
                pl.BlockSpec((1, C, 1), lambda b, t: (b, 0, 0)),
                pl.BlockSpec((C, C1), lambda b, t: (0, 0)),
                pl.BlockSpec((2 * C, C), lambda b, t: (0, 0)),
                pl.BlockSpec((2 * C, 1), lambda b, t: (0, 0)),
                pl.BlockSpec((C, 2 * C), lambda b, t: (0, 0)),
                pl.BlockSpec((C1, C1), lambda b, t: (0, 0)),
                pl.BlockSpec((C1, C), lambda b, t: (0, 0)),
            ],
            out_specs=pl.BlockSpec((1, C1, tile), lambda b, t: (b, 0, t)),
        ),
        compiler_params=pltpu.CompilerParams(
            # both axes independent -> both v7x TensorCores get work even if B=1
            dimension_semantics=("parallel", "parallel")),
    )(xf, w_eff_row, b_eff, cw_scaled, Wb, W1, s1, W2, A_fold, Wcv2_b)

    return out[:, :, :HW].reshape(B, C1, H, W)


# -----------------------------------------------------------------------------
# Pure-JAX reference mirroring the PyTorch PSAFFN forward (BN in eval mode).
# -----------------------------------------------------------------------------
def _reference(x, p):
    B, C1, H, W = x.shape
    C = p["Wf1"].shape[1]
    C2 = p["Wv_s"].shape[0]
    f32 = jnp.float32
    hsig = lambda z: jnp.clip(z / 6.0 + 0.5, 0.0, 1.0)

    def conv1x1(Wt, bias, z):
        y = jnp.einsum("oc,bchw->bohw", Wt.astype(f32), z.astype(f32))
        if bias is not None:
            y = y + bias.astype(f32)[None, :, None, None]
        return y

    y = conv1x1(p["Wcv1"], None, x)
    a, b = y[:, :C], y[:, C:]

    # SpatialSelfAttention(b)
    val = conv1x1(p["Wv_s"], p["bv_s"], b).reshape(B, C2, -1)
    qm = conv1x1(p["Wq_s"], p["bq_s"], b)
    q = jax.nn.softmax(jnp.mean(qm, axis=(2, 3)).reshape(B, 1, C2), axis=-1)
    s = hsig(jnp.matmul(q, val).reshape(B, 1, H, W)) * b

    # ChannelSelfAttention(s)
    qc = conv1x1(p["Wq_c"], p["bq_c"], s).reshape(B, -1)
    pr = jax.nn.softmax(qc, axis=-1).reshape(B, -1, 1)
    vc = conv1x1(p["Wv_c"], p["bv_c"], s).reshape(B, C2, -1)
    am = jnp.matmul(vc, pr)                                             # (B, C2, 1)
    o = jnp.einsum("oc,bcx->box", p["Wo"].astype(f32), am) \
        + p["bo"].astype(f32)[None, :, None]
    o = o.transpose(0, 2, 1)                                            # (B, 1, C)
    mu = jnp.mean(o, axis=-1, keepdims=True)
    var = jnp.mean((o - mu) ** 2, axis=-1, keepdims=True)
    ln = (o - mu) / jnp.sqrt(var + 1e-5) * p["ln_g"].astype(f32) + p["ln_b"].astype(f32)
    refined = hsig(ln).reshape(B, C, 1, 1) * s

    b2 = b + (b + jnp.tanh(p["gamma"]) * refined)

    # FFN (eval-mode BatchNorm)
    h = conv1x1(p["Wf1"], None, b2)
    scale = p["bn_g"].astype(f32) / jnp.sqrt(p["bn_rv"].astype(f32) + 1e-5)
    shift = p["bn_b"].astype(f32) - p["bn_rm"].astype(f32) * scale
    h = jnp.maximum(h * scale[None, :, None, None] + shift[None, :, None, None], 0.0)
    b3 = b2 + conv1x1(p["Wf2"], None, h)

    return conv1x1(p["Wcv2"], None, jnp.concatenate([a, b3], axis=1))


if __name__ == "__main__":
    B, C1, H, W = 2, 8, 16, 20          # HW = 320 (not lane aligned -> padding + masking)
    E = 0.5
    C = int(C1 * E)                     # PSA channel count (b branch)
    C2 = C // 2

    keys = jax.random.split(jax.random.PRNGKey(0), 22)
    rnd = lambda i, shape, s=0.1: s * jax.random.normal(keys[i], shape, dtype=jnp.float32)

    x = jax.random.normal(keys[0], (B, C1, H, W), dtype=jnp.float32)
    params = dict(
        Wcv1=rnd(1, (2 * C, C1)), Wcv2=rnd(2, (C1, 2 * C)),
        Wv_s=rnd(3, (C2, C)), bv_s=rnd(4, (C2,)),
        Wq_s=rnd(5, (C2, C)), bq_s=rnd(6, (C2,)),
        Wq_c=rnd(7, (1, C)), bq_c=rnd(8, (1,)),
        Wv_c=rnd(9, (C2, C)), bv_c=rnd(10, (C2,)),
        Wo=rnd(11, (C, C2)), bo=rnd(12, (C,)),
        ln_g=1.0 + rnd(13, (C,)), ln_b=rnd(14, (C,)),
        gamma=jnp.array(0.3, jnp.float32),   # nonzero so the channel-attn path is exercised
        Wf1=rnd(15, (2 * C, C)),
        bn_g=1.0 + rnd(16, (2 * C,)), bn_b=rnd(17, (2 * C,)),
        bn_rm=rnd(18, (2 * C,)), bn_rv=1.0 + jnp.abs(rnd(19, (2 * C,))),
        Wf2=rnd(20, (C, 2 * C)),
    )

    ref = _reference(x, params)

    # 1) default spatial tile (single tile, masked padded lanes)
    out = jax.block_until_ready(psaffn_forward(x, params))
    assert out.shape == (B, C1, H, W) and out.dtype == x.dtype
    assert jnp.allclose(out, ref, rtol=2e-3, atol=2e-4), "mismatch vs reference (f32)"

    # 2) small tile -> multi-tile reductions / online-softmax path
    out_t = jax.block_until_ready(psaffn_forward(x, params, tile_hw=128))
    assert jnp.allclose(out_t, ref, rtol=2e-3, atol=2e-4), "mismatch vs reference (tiled)"

    # 3) bf16 I/O (f32 accumulation inside the kernels)
    x_bf = x.astype(jnp.bfloat16)
    out_bf = jax.block_until_ready(psaffn_forward(x_bf, params))
    assert out_bf.dtype == jnp.bfloat16
    ref_bf = _reference(x_bf.astype(jnp.float32), params)
    assert jnp.allclose(out_bf.astype(jnp.float32), ref_bf, rtol=4e-2, atol=4e-2), \
        "mismatch vs reference (bf16)"

    print("KERNEL_OK")
</pallas_src>

<mosaic_0001>
module attributes {stable_mosaic.version = 11 : i64} {
  func.func @_spatial_stats_kernel(%arg0: i32, %arg1: i32, %arg2: memref<1x8x384xf32, #tpu.memory_space<vmem>>, %arg3: memref<2x8xf32, #tpu.memory_space<vmem>>, %arg4: memref<2x1xf32, #tpu.memory_space<vmem>>, %arg5: memref<8x2xf32, #tpu.memory_space<vmem>>, %arg6: memref<2x1xf32, #tpu.memory_space<vmem>>, %arg7: memref<1x8x1xf32, #tpu.memory_space<vmem>>, %arg8: memref<1x1x1xf32, #tpu.memory_space<vmem>>, %arg9: memref<8x1xf32, #tpu.memory_space<vmem>>) attributes {dimension_semantics = [#tpu.dimension_semantics<parallel>, #tpu.dimension_semantics<arbitrary>], iteration_bounds = array<i64: 2, 1>, scalar_prefetch = 0 : i64, scratch_operands = 1 : i64, tpu.core_type = #tpu.core_type<tc>, window_params = [{transform_indices = @transform_0, window_bounds = array<i64: 1, 8, 384>}, {pipeline_mode = #tpu.pipeline_mode<synchronous>, transform_indices = @transform_1, window_bounds = array<i64: 2, 8>}, {pipeline_mode = #tpu.pipeline_mode<synchronous>, transform_indices = @transform_2, window_bounds = array<i64: 2, 1>}, {pipeline_mode = #tpu.pipeline_mode<synchronous>, transform_indices = @transform_3, window_bounds = array<i64: 8, 2>}, {pipeline_mode = #tpu.pipeline_mode<synchronous>, transform_indices = @transform_4, window_bounds = array<i64: 2, 1>}, {transform_indices = @transform_5, window_bounds = array<i64: 1, 8, 1>}, {transform_indices = @transform_6, window_bounds = array<i64: 1, 1, 1>}]} {
    %c0_i32 = arith.constant 0 : i32
    %0 = arith.cmpi eq, %arg1, %c0_i32 : i32
    %1 = arith.extui %0 : i1 to i32
    %c0_i32_0 = arith.constant 0 : i32
    %2 = arith.cmpi ne, %1, %c0_i32_0 : i32
    scf.if %2 {
      %cst_9 = arith.constant 0.000000e+00 : f32
      %13 = vector.broadcast %cst_9 : f32 to vector<8x1xf32>
      %c0_10 = arith.constant 0 : index
      %c0_11 = arith.constant 0 : index
      %14 = vector.load %arg9[%c0_10, %c0_11] : memref<8x1xf32, #tpu.memory_space<vmem>>, vector<8x1xf32>
      tpu.vector_store %arg9[%c0_10, %c0_11], %13 {strides = array<i32>} : memref<8x1xf32, #tpu.memory_space<vmem>>, vector<8x1xf32>,
    } else {
    }
    %c0 = arith.constant 0 : index
    %c0_1 = arith.constant 0 : index
    %3 = vector.load %arg9[%c0, %c0_1] : memref<8x1xf32, #tpu.memory_space<vmem>>, vector<8x1xf32>
    %c0_2 = arith.constant 0 : index
    %c0_3 = arith.constant 0 : index
    %c0_4 = arith.constant 0 : index
    %4 = vector.load %arg2[%c0_2, %c0_3, %c0_4] : memref<1x8x384xf32, #tpu.memory_space<vmem>>, vector<1x8x384xf32>
    %5 = vector.shape_cast %4 : vector<1x8x384xf32> to vector<8x384xf32>
    %cst = arith.constant dense<0.000000e+00> : vector<8xf32>
    %6 = vector.multi_reduction <add>, %5, %cst [1] : vector<8x384xf32> to vector<8xf32>
    %7 = vector.shape_cast %6 : vector<8xf32> to vector<8x1xf32>
    %8 = arith.addf %3, %7 : vector<8x1xf32>
    %c0_5 = arith.constant 0 : index
    %c0_6 = arith.constant 0 : index
    %9 = vector.load %arg9[%c0_5, %c0_6] : memref<8x1xf32, #tpu.memory_space<vmem>>, vector<8x1xf32>
    tpu.vector_store %arg9[%c0_5, %c0_6], %8 {strides = array<i32>} : memref<8x1xf32, #tpu.memory_space<vmem>>, vector<8x1xf32>,
    %c0_i32_7 = arith.constant 0 : i32
    %10 = arith.cmpi eq, %arg1, %c0_i32_7 : i32
    %11 = arith.extui %10 : i1 to i32
    %c0_i32_8 = arith.constant 0 : i32
    %12 = arith.cmpi ne, %11, %c0_i32_8 : i32
    scf.if %12 {
      %c0_9 = arith.constant 0 : index
      %c0_10 = arith.constant 0 : index
      %13 = vector.load %arg9[%c0_9, %c0_10] : memref<8x1xf32, #tpu.memory_space<vmem>>, vector<8x1xf32>
      %cst_11 = arith.constant 3.125000e-03 : f32
      %14 = vector.broadcast %cst_11 : f32 to vector<8x1xf32>
      %15 = arith.mulf %13, %14 : vector<8x1xf32>
      %c0_12 = arith.constant 0 : index
      %c0_13 = arith.constant 0 : index
      %16 = vector.load %arg3[%c0_12, %c0_13] : memref<2x8xf32, #tpu.memory_space<vmem>>, vector<2x8xf32>
      %cst_14 = arith.constant dense<0.000000e+00> : vector<2x1xf32>
      %17 = tpu.matmul %16, %15, %cst_14 {dimension_numbers = #tpu.dot_dimension_numbers<[1], [0], [0], [1], [0, 0, 1, 1], [], []>} : vector<2x8xf32>, vector<8x1xf32>, vector<2x1xf32> -> vector<2x1xf32>
      %c0_15 = arith.constant 0 : index
      %c0_16 = arith.constant 0 : index
      %18 = vector.load %arg4[%c0_15, %c0_16] : memref<2x1xf32, #tpu.memory_space<vmem>>, vector<2x1xf32>
      %19 = arith.addf %17, %18 : vector<2x1xf32>
      %cst_17 = arith.constant dense<0xFF800000> : vector<1xf32>
      %20 = vector.multi_reduction <maximumf>, %19, %cst_17 [0] : vector<2x1xf32> to vector<1xf32>
      %21 = vector.shape_cast %20 : vector<1xf32> to vector<1x1xf32>
      %22 = vector.broadcast %21 : vector<1x1xf32> to vector<2x1xf32>
      %23 = arith.subf %19, %22 : vector<2x1xf32>
      %24 = math.exp %23 : vector<2x1xf32>
      %cst_18 = arith.constant dense<0.000000e+00> : vector<1xf32>
      %25 = vector.multi_reduction <add>, %24, %cst_18 [0] : vector<2x1xf32> to vector<1xf32>
      %26 = vector.shape_cast %25 : vector<1xf32> to vector<1x1xf32>
      %27 = vector.broadcast %26 : vector<1x1xf32> to vector<2x1xf32>
      %28 = arith.divf %24, %27 : vector<2x1xf32>
      %c0_19 = arith.constant 0 : index
      %c0_20 = arith.constant 0 : index
      %29 = vector.load %arg5[%c0_19, %c0_20] : memref<8x2xf32, #tpu.memory_space<vmem>>, vector<8x2xf32>
      %cst_21 = arith.constant dense<0.000000e+00> : vector<8x1xf32>
      %30 = tpu.matmul %29, %28, %cst_21 {dimension_numbers = #tpu.dot_dimension_numbers<[1], [0], [0], [1], [0, 0, 1, 1], [], []>} : vector<8x2xf32>, vector<2x1xf32>, vector<8x1xf32> -> vector<8x1xf32>
      %c0_22 = arith.constant 0 : index
      %c0_23 = arith.constant 0 : index
      %c0_24 = arith.constant 0 : index
      %31 = vector.load %arg7[%c0_22, %c0_23, %c0_24] : memref<1x8x1xf32, #tpu.memory_space<vmem>>, vector<1x8x1xf32>
      %32 = vector.shape_cast %31 : vector<1x8x1xf32> to vector<8x1xf32>
      %33 = vector.shape_cast %30 : vector<8x1xf32> to vector<1x8x1xf32>
      tpu.vector_store %arg7[%c0_22, %c0_23, %c0_24], %33 {strides = array<i32>} : memref<1x8x1xf32, #tpu.memory_space<vmem>>, vector<1x8x1xf32>,
      %c0_25 = arith.constant 0 : index
      %c0_26 = arith.constant 0 : index
      %34 = vector.load %arg6[%c0_25, %c0_26] : memref<2x1xf32, #tpu.memory_space<vmem>>, vector<2x1xf32>
      %35 = arith.mulf %28, %34 : vector<2x1xf32>
      %cst_27 = arith.constant dense<0.000000e+00> : vector<1xf32>
      %36 = vector.multi_reduction <add>, %35, %cst_27 [0] : vector<2x1xf32> to vector<1xf32>
      %37 = vector.shape_cast %36 : vector<1xf32> to vector<1x1xf32>
      %c0_28 = arith.constant 0 : index
      %c0_29 = arith.constant 0 : index
      %c0_30 = arith.constant 0 : index
      %38 = vector.load %arg8[%c0_28, %c0_29, %c0_30] : memref<1x1x1xf32, #tpu.memory_space<vmem>>, vector<1x1x1xf32>
      %39 = vector.shape_cast %38 : vector<1x1x1xf32> to vector<1x1xf32>
      %40 = vector.shape_cast %37 : vector<1x1xf32> to vector<1x1x1xf32>
      tpu.vector_store %arg8[%c0_28, %c0_29, %c0_30], %40 {strides = array<i32>} : memref<1x1x1xf32, #tpu.memory_space<vmem>>, vector<1x1x1xf32>,
    } else {
    }
    return
  }
  func.func @transform_0(%arg0: i32, %arg1: i32) -> (i32, i32, i32) {
    %c0_i32 = arith.constant 0 : i32
    %c0_i32_0 = arith.constant 0 : i32
    return %arg0, %c0_i32, %arg1 : i32, i32, i32
  }
  func.func @transform_1(%arg0: i32, %arg1: i32) -> (i32, i32) {
    %c0_i32 = arith.constant 0 : i32
    %c0_i32_0 = arith.constant 0 : i32
    %c0_i32_1 = arith.constant 0 : i32
    return %c0_i32, %c0_i32_0 : i32, i32
  }
  func.func @transform_2(%arg0: i32, %arg1: i32) -> (i32, i32) {
    %c0_i32 = arith.constant 0 : i32
    %c0_i32_0 = arith.constant 0 : i32
    %c0_i32_1 = arith.constant 0 : i32
    return %c0_i32, %c0_i32_0 : i32, i32
  }
  func.func @transform_3(%arg0: i32, %arg1: i32) -> (i32, i32) {
    %c0_i32 = arith.constant 0 : i32
    %c0_i32_0 = arith.constant 0 : i32
    %c0_i32_1 = arith.constant 0 : i32
    return %c0_i32, %c0_i32_0 : i32, i32
  }
  func.func @transform_4(%arg0: i32, %arg1: i32) -> (i32, i32) {
    %c0_i32 = arith.constant 0 : i32
    %c0_i32_0 = arith.constant 0 : i32
    %c0_i32_1 = arith.constant 0 : i32
    return %c0_i32, %c0_i32_0 : i32, i32
  }
  func.func @transform_5(%arg0: i32, %arg1: i32) -> (i32, i32, i32) {
    %c0_i32 = arith.constant 0 : i32
    %c0_i32_0 = arith.constant 0 : i32
    %c0_i32_1 = arith.constant 0 : i32
    return %arg0, %c0_i32, %c0_i32_0 : i32, i32, i32
  }
  func.func @transform_6(%arg0: i32, %arg1: i32) -> (i32, i32, i32) {
    %c0_i32 = arith.constant 0 : i32
    %c0_i32_0 = arith.constant 0 : i32
    %c0_i32_1 = arith.constant 0 : i32
    return %arg0, %c0_i32, %c0_i32_0 : i32, i32, i32
  }
}

</mosaic_0001>

<llo_original>
// kernel: tpu_custom_call.1
$region0: #{tpu_custom_call.1}
  #allocation0 [shape = 'u32[]', space=smem, size = 0x4, offset = 0x4, fixed_abs, tag = 'smem constant byte address 0x4 - core index']
  #allocation1 [shape = 'u32[72,128]{1,0:T(1,128)}', space=vmem, size = 0x9000, scoped, tag = 'internal scratch']
  #allocation2 [shape = 'f32[8,1]{1,0:T(8,128)}', space=vmem, size = 0x1000, scoped, tag = 'scratch operand']
  %s0 = inlined_call_operand.hbm [shape: f32[2,8,384], index: 0, kind: input, shape index: {}]
  %s1 = inlined_call_operand.vmem [shape: f32[2,8], index: 1, kind: input, shape index: {}]
  %s2 = inlined_call_operand.vmem [shape: f32[2,1], index: 2, kind: input, shape index: {}]
  %s3 = inlined_call_operand.vmem [shape: f32[8,2], index: 3, kind: input, shape index: {}]
  %s4 = inlined_call_operand.vmem [shape: f32[2,1], index: 4, kind: input, shape index: {}]
  %s5 = inlined_call_operand.vmem [shape: f32[2,8,1], index: 5, kind: output, shape index: {0}]
  %s6 = inlined_call_operand.vmem [shape: f32[2,1,1], index: 6, kind: output, shape index: {1}]
  %7 = xla_tuple %s5, %s6
  %s8 = sld [smem:[#allocation0]]
  $region73: #{tpu_custom_call.1} parent=0
    _
  %s10 = ssub.s32 1, %s8
  %s11 = scalar_select 0, %s10, %s8
  $region1: #{tpu_custom_call.1} parent=0
    #allocation3 [shape = 'u8[24576]{0}', space=vmem, size = 0x6000, scoped, tag = 'input window, operand 0']
    #allocation4 [shape = 's32[2]{0}', space=sflag, size = 0x8, scoped, tag = 'scoped memory for tpu_custom_call.1']
    %12 = vsyncpa [#allocation4], 0
    %s13 = scalar_lea.sflag [#allocation4], 1
    %14 = vsyncpa %s13, 0
    loop: start=0, step=1, limit=4
    $region2: #{tpu_custom_call.1} parent=1 // loop_pre_header
      _
    $region3: #{tpu_custom_call.1} parent=1 // loop_header
      %s16 = sphi 0, %s20
      %p17 = scmp.ge.s32.totalorder %s16, 4
      %s23 = sphi 0, %s35
      %s24 = sphi 0, %s31
      %s25 = sphi 0, %s23
      %s26 = sphi 0, %s24
      %s27 = sphi 0, %s25
      %s28 = sphi 0, %s26
      %s40 = sphi 0, %s42
      %s43 = sphi 0, %s40
      %s44 = sphi 0, %s43
      %s60 = sphi 0, %s44
      %s64 = sphi 0, %s64
      %s66 = sphi 0, %s64
      %s67 = sphi 0, %s66
      %s81 = sphi 0, %s67
      %s85 = sphi 0, %s85
      %s87 = sphi 0, %s85
      %s88 = sphi 0, %s87
      %s102 = sphi 0, %s88
      %s106 = sphi 0, %s106
      %s108 = sphi 0, %s106
      %s109 = sphi 0, %s108
      %s123 = sphi 0, %s109
      %s127 = sphi 0, %s127
      %s129 = sphi 0, %s127
      %s130 = sphi 0, %s129
      %s144 = sphi 0, %s130
      %s150 = sphi 0, %s152
      %s153 = sphi 0, %s150
      %s154 = sphi 0, %s153
      %s170 = sphi 0, %s154
      %s176 = sphi 0, %s178
      %s179 = sphi 0, %s176
      %s180 = sphi 0, %s179
      %s196 = sphi 0, %s180
    $region4: #{tpu_custom_call.1} parent=1 // loop_header_branch
      %19 = sbr.rel (%p17) target = $region8
    $region5: #{tpu_custom_call.1} parent=1 // loop_body
      %s21 = ssub.s32 %s16, 1
      %s22 = ssub.s32 %s16, 2
      %s29 = sadd.s32 1, %s24
      %p30 = scmp.ge.s32.totalorder %s29, 1
      %s31 = scalar_select %p30, 0, %s29
      %s32 = sadd.s32 1, %s23
      %s33 = scalar_select %p30, %s32, %s23
      %p34 = scmp.ge.s32.totalorder %s33, 2
      %s35 = scalar_select %p34, 0, %s33
      %s36 = ssub.s32 %s23, %s35
      %s37 = ssub.s32 %s24, %s31
      %s38 = sor.u32 %s36, %s37
      %p39 = scmp.eq.s32.totalorder %s38, 0
      %s41 = sadd.s32 %s40, 1
      %s42 = scalar_select %p39, %s40, %s41
      %p45 = pneg %p39
      %p46 = scmp.eq.s32.totalorder %s16, 1
      %p47 = por %p45, %p46
      %p48 = scmp.ne.s32.totalorder %s40, %s43
      %p49 = scmp.eq.s32.totalorder %s16, 0
      %p50 = por %p48, %p49
      %p51 = scmp.ne.s32.totalorder %s40, %s43
      %p52 = scmp.eq.s32.totalorder %s21, 1
      %p53 = por %p51, %p52
      %p54 = scmp.ne.s32.totalorder %s43, %s44
      %p55 = scmp.eq.s32.totalorder %s21, 0
      %p56 = por %p54, %p55
      %p57 = scmp.ne.s32.totalorder %s43, %s44
      %p58 = scmp.eq.s32.totalorder %s22, 1
      %p59 = por %p57, %p58
      %p61 = scmp.ne.s32.totalorder %s44, %s60
      %p62 = scmp.eq.s32.totalorder %s22, 0
      %p63 = por %p61, %p62
      %s65 = sadd.s32 %s64, 1
      %p68 = scmp.eq.s32.totalorder %s16, 1
      %p69 = scmp.ne.s32.totalorder %s64, %s66
      %p70 = scmp.eq.s32.totalorder %s16, 0
      %p71 = por %p69, %p70
      %p72 = scmp.ne.s32.totalorder %s64, %s66
      %p73 = scmp.eq.s32.totalorder %s21, 1
      %p74 = por %p72, %p73
      %p75 = scmp.ne.s32.totalorder %s66, %s67
      %p76 = scmp.eq.s32.totalorder %s21, 0
      %p77 = por %p75, %p76
      %p78 = scmp.ne.s32.totalorder %s66, %s67
      %p79 = scmp.eq.s32.totalorder %s22, 1
      %p80 = por %p78, %p79
      %p82 = scmp.ne.s32.totalorder %s67, %s81
      %p83 = scmp.eq.s32.totalorder %s22, 0
      %p84 = por %p82, %p83
      %s86 = sadd.s32 %s85, 1
      %p89 = scmp.eq.s32.totalorder %s16, 1
      %p90 = scmp.ne.s32.totalorder %s85, %s87
      %p91 = scmp.eq.s32.totalorder %s16, 0
      %p92 = por %p90, %p91
      %p93 = scmp.ne.s32.totalorder %s85, %s87
      %p94 = scmp.eq.s32.totalorder %s21, 1
      %p95 = por %p93, %p94
      %p96 = scmp.ne.s32.totalorder %s87, %s88
      %p97 = scmp.eq.s32.totalorder %s21, 0
      %p98 = por %p96, %p97
      %p99 = scmp.ne.s32.totalorder %s87, %s88
      %p100 = scmp.eq.s32.totalorder %s22, 1
      %p101 = por %p99, %p100
      %p103 = scmp.ne.s32.totalorder %s88, %s102
      %p104 = scmp.eq.s32.totalorder %s22, 0
      %p105 = por %p103, %p104
      %s107 = sadd.s32 %s106, 1
      %p110 = scmp.eq.s32.totalorder %s16, 1
      %p111 = scmp.ne.s32.totalorder %s106, %s108
      %p112 = scmp.eq.s32.totalorder %s16, 0
      %p113 = por %p111, %p112
      %p114 = scmp.ne.s32.totalorder %s106, %s108
      %p115 = scmp.eq.s32.totalorder %s21, 1
      %p116 = por %p114, %p115
      %p117 = scmp.ne.s32.totalorder %s108, %s109
      %p118 = scmp.eq.s32.totalorder %s21, 0
      %p119 = por %p117, %p118
      %p120 = scmp.ne.s32.totalorder %s108, %s109
      %p121 = scmp.eq.s32.totalorder %s22, 1
      %p122 = por %p120, %p121
      %p124 = scmp.ne.s32.totalorder %s109, %s123
      %p125 = scmp.eq.s32.totalorder %s22, 0
      %p126 = por %p124, %p125
      %s128 = sadd.s32 %s127, 1
      %p131 = scmp.eq.s32.totalorder %s16, 1
      %p132 = scmp.ne.s32.totalorder %s127, %s129
      %p133 = scmp.eq.s32.totalorder %s16, 0
      %p134 = por %p132, %p133
      %p135 = scmp.ne.s32.totalorder %s127, %s129
      %p136 = scmp.eq.s32.totalorder %s21, 1
      %p137 = por %p135, %p136
      %p138 = scmp.ne.s32.totalorder %s129, %s130
      %p139 = scmp.eq.s32.totalorder %s21, 0
      %p140 = por %p138, %p139
      %p141 = scmp.ne.s32.totalorder %s129, %s130
      %p142 = scmp.eq.s32.totalorder %s22, 1
      %p143 = por %p141, %p142
      %p145 = scmp.ne.s32.totalorder %s130, %s144
      %p146 = scmp.eq.s32.totalorder %s22, 0
      %p147 = por %p145, %p146
      %s148 = ssub.s32 %s23, %s35
      %p149 = scmp.eq.s32.totalorder %s148, 0
      %s151 = sadd.s32 %s150, 1
      %s152 = scalar_select %p149, %s150, %s151
      %p155 = pneg %p149
      %p156 = scmp.eq.s32.totalorder %s16, 1
      %p157 = por %p155, %p156
      %p158 = scmp.ne.s32.totalorder %s150, %s153
      %p159 = scmp.eq.s32.totalorder %s16, 0
      %p160 = por %p158, %p159
      %p161 = scmp.ne.s32.totalorder %s150, %s153
      %p162 = scmp.eq.s32.totalorder %s21, 1
      %p163 = por %p161, %p162
      %p164 = scmp.ne.s32.totalorder %s153, %s154
      %p165 = scmp.eq.s32.totalorder %s21, 0
      %p166 = por %p164, %p165
      %p167 = scmp.ne.s32.totalorder %s153, %s154
      %p168 = scmp.eq.s32.totalorder %s22, 1
      %p169 = por %p167, %p168
      %p171 = scmp.ne.s32.totalorder %s154, %s170
      %p172 = scmp.eq.s32.totalorder %s22, 0
      %p173 = por %p171, %p172
      %s174 = ssub.s32 %s23, %s35
      %p175 = scmp.eq.s32.totalorder %s174, 0
      %s177 = sadd.s32 %s176, 1
      %s178 = scalar_select %p175, %s176, %s177
      %p181 = pneg %p175
      %p182 = scmp.eq.s32.totalorder %s16, 1
      %p183 = por %p181, %p182
      %p184 = scmp.ne.s32.totalorder %s176, %s179
      %p185 = scmp.eq.s32.totalorder %s16, 0
      %p186 = por %p184, %p185
      %p187 = scmp.ne.s32.totalorder %s176, %s179
      %p188 = scmp.eq.s32.totalorder %s21, 1
      %p189 = por %p187, %p188
      %p190 = scmp.ne.s32.totalorder %s179, %s180
      %p191 = scmp.eq.s32.totalorder %s21, 0
      %p192 = por %p190, %p191
      %p193 = scmp.ne.s32.totalorder %s179, %s180
      %p194 = scmp.eq.s32.totalorder %s22, 1
      %p195 = por %p193, %p194
      %p197 = scmp.ne.s32.totalorder %s180, %s196
      %p198 = scmp.eq.s32.totalorder %s22, 0
      %p199 = por %p197, %p198
      %p200 = scmp.le.s32.totalorder 1, %s16
      %p201 = scmp.lt.s32.totalorder %s16, 3
      %p202 = pnand %p200, %p201
      %p203 = pneg %p202
      // Predicated region
      $region9: #{tpu_custom_call.1} parent=5 // pred_check
        _
      $region10: #{tpu_custom_call.1} parent=5 // pred_check_branch
        %205 = sbr.rel (%p202) target = $region12
      $region11: #{tpu_custom_call.1} parent=5 // pred_region
        %s206 = ssub.s32 %s16, 1
        // Predicated region
        $region13: #{tpu_custom_call.1} parent=11 // pred_check
          %p207 = pneg %p77
        $region14: #{tpu_custom_call.1} parent=11 // pred_check_branch
          %209 = sbr.rel (%p207) target = $region16
        $region15: #{tpu_custom_call.1} parent=11 // pred_region
          _
        $region16: #{tpu_custom_call.1} parent=11 // pred_fallthru
          _
        // Predicated region
        $region17: #{tpu_custom_call.1} parent=11 // pred_check
          %p210 = pneg %p98
        $region18: #{tpu_custom_call.1} parent=11 // pred_check_branch
          %212 = sbr.rel (%p210) target = $region20
        $region19: #{tpu_custom_call.1} parent=11 // pred_region
          _
        $region20: #{tpu_custom_call.1} parent=11 // pred_fallthru
          _
        // Predicated region
        $region21: #{tpu_custom_call.1} parent=11 // pred_check
          %p213 = pneg %p119
        $region22: #{tpu_custom_call.1} parent=11 // pred_check_branch
          %215 = sbr.rel (%p213) target = $region24
        $region23: #{tpu_custom_call.1} parent=11 // pred_region
          _
        $region24: #{tpu_custom_call.1} parent=11 // pred_fallthru
          _
        // Predicated region
        $region25: #{tpu_custom_call.1} parent=11 // pred_check
          %p216 = pneg %p140
        $region26: #{tpu_custom_call.1} parent=11 // pred_check_branch
          %218 = sbr.rel (%p216) target = $region28
        $region27: #{tpu_custom_call.1} parent=11 // pred_region
          _
        $region28: #{tpu_custom_call.1} parent=11 // pred_fallthru
          _
      $region12: #{tpu_custom_call.1} parent=5 // pred_fallthru
        _
      %p219 = scmp.lt.s32.totalorder %s16, 2
      // Predicated region
      $region29: #{tpu_custom_call.1} parent=5 // pred_check
        %p220 = pneg %p219
      $region30: #{tpu_custom_call.1} parent=5 // pred_check_branch
        %222 = sbr.rel (%p220) target = $region32
      $region31: #{tpu_custom_call.1} parent=5 // pred_region
        // Predicated region
        $region33: #{tpu_custom_call.1} parent=31 // pred_check
          %p223 = pneg %p50
        $region34: #{tpu_custom_call.1} parent=31 // pred_check_branch
          %225 = sbr.rel (%p223) target = $region36
        $region35: #{tpu_custom_call.1} parent=31 // pred_region
          %s226 = sand.u32 %s40, 1
          %s227 = scalar_lea.sflag [#allocation4], %s226
          %s228 = sand.u32 %s40, 1
          %s229 = smul.addr %s228, 24
          %s230 = scalar_lea.vmem [#allocation3], %s229
          %s231 = smul.u32 3, %s24
          %233 = vsyncadd %s227, 0
          %s234 = smul.addr %s23, 3
          %s235 = sadd.s32 %s231, %s234
          %s236 = smul.addr %s235, 8
          %s237 = scalar_lea.hbm %s0, %s236
          %s239 = sshll.u32 %s237, 4
          %s240 = int_to_ptr.hbm [resolvable:$true] %s239
          %s241 = sshll.u32 %s230, 4
          %s242 = int_to_ptr.vmem [resolvable:$true] %s241
          %244 = dma.hbm_to_vmem [thread:$0]  %s240, 384, %s242, %s227
        $region36: #{tpu_custom_call.1} parent=31 // pred_fallthru
          _
      $region32: #{tpu_custom_call.1} parent=5 // pred_fallthru
        _
      %p245 = scmp.le.s32.totalorder 1, %s16
      %p246 = scmp.lt.s32.totalorder %s16, 3
      %p247 = pnand %p245, %p246
      %p248 = pneg %p247
      // Predicated region
      $region37: #{tpu_custom_call.1} parent=5 // pred_check
        _
      $region38: #{tpu_custom_call.1} parent=5 // pred_check_branch
        %250 = sbr.rel (%p247) target = $region40
      $region39: #{tpu_custom_call.1} parent=5 // pred_region
        %s251 = ssub.s32 %s16, 1
        %s252 = sand.u32 %s43, 1
        %s253 = scalar_lea.sflag [#allocation4], %s252
        %s254 = sand.u32 %s43, 1
        %s255 = smul.addr %s254, 24
        %s256 = scalar_lea.vmem [#allocation3], %s255
        // Predicated region
        $region41: #{tpu_custom_call.1} parent=39 // pred_check
          %p257 = pneg %p56
        $region42: #{tpu_custom_call.1} parent=39 // pred_check_branch
          %259 = sbr.rel (%p257) target = $region44
        $region43: #{tpu_custom_call.1} parent=39 // pred_region
          %261 = dma.done %s253, 384
        $region44: #{tpu_custom_call.1} parent=39 // pred_fallthru
          _
        %s262 = sand.u32 %s43, 1
        %s263 = scalar_lea.sflag [#allocation4], %s262
        %s264 = sand.u32 %s43, 1
        %s265 = smul.addr %s264, 24
        %s266 = scalar_lea.vmem [#allocation3], %s265
        %p267 = pneg %p56
        %p268 = pneg %p53
        %p269 = pneg %p77
        %p270 = pneg %p74
        %p271 = pneg %p98
        %p272 = pneg %p95
        %p273 = pneg %p119
        %p274 = pneg %p116
        %p275 = pneg %p140
        %p276 = pneg %p137
        %p277 = pneg %p166
        %p278 = pneg %p163
        %p279 = scmp.lt.s32.totalorder %s25, 1
        %s280 = scalar_select %p279, %s25, 1
        %s281 = smul.addr %s280, 8
        %s282 = scalar_lea.vmem %s5, %s281
        %p283 = pneg %p192
        %p284 = pneg %p189
        %p285 = scmp.lt.s32.totalorder %s25, 1
        %s286 = scalar_select %p285, %s25, 1
        %s287 = scalar_lea.vmem %s6, %s286
        %s288 = smul.u32 3, %s26
        %p289 = scmp.lt.s32.totalorder %s25, 1
        %s290 = scalar_select %p289, %s25, 1
        %s291 = smul.addr %s290, 8
        %s292 = scalar_lea.vmem %s5, %s291
        %p293 = scmp.lt.s32.totalorder %s25, 1
        %s294 = scalar_select %p293, %s25, 1
        %s295 = scalar_lea.vmem %s6, %s294
        %p296 = scmp.eq.s32.totalorder %s26, 0
        // Predicated region
        $region45: #{tpu_custom_call.1} parent=39 // pred_check
          %p297 = pneg %p296
        $region46: #{tpu_custom_call.1} parent=39 // pred_check_branch
          %299 = sbr.rel (%p297) target = $region48
        $region47: #{tpu_custom_call.1} parent=39 // pred_region
          %vm300 = vcmask 7168
          %301 = vst.msk [vmem:[#allocation2] sm:$0xff] %vm300, 0.0
        $region48: #{tpu_custom_call.1} parent=39 // pred_fallthru
          _
        %v302 = vld [vmem:[#allocation2] sm:$0xff]
        %v303 = vld [vmem:[%s256] sm:$0xff]
        %v304 = vld [vmem:[%s256 + $0x8] sm:$0xff]
        %v305 = vld [vmem:[%s256 + $0x10] sm:$0xff]
        %v306 = vadd.f32 %v303, %v304
        %v307 = vadd.f32 %v306, %v305
        %308 = vadd.xlane.f32.xlu0 %v307
        %v309 = vpop.xlane.xlu0 %308
        %v310 = vadd.f32 %v302, %v309
        %vm311 = vcmask 7168
        %312 = vst.msk [vmem:[#allocation2] sm:$0xff] %vm311, %v310
        // Predicated region
        $region49: #{tpu_custom_call.1} parent=39 // pred_check
          %p313 = pneg %p296
        $region50: #{tpu_custom_call.1} parent=39 // pred_check_branch
          %315 = sbr.rel (%p313) target = $region52
        $region51: #{tpu_custom_call.1} parent=39 // pred_region
          %v316 = vld [vmem:[#allocation2] sm:$0xff]
          %v317 = vmul.f32 %v316, 0.003125
          %v318 = vld [vmem:[%s1] sm:$0x3]
          %v319 = vld [vmem:[%s2] sm:$0x3]
          %vm320 = vcmask 64512
          %v322 = vsel %vm320, %v318, 0
          %324 = vmatpush.msra.mxu0 0.0
          %325 = vmatpush.msra.mxu0 0.0
          %326 = vmatpush.msra.mxu0 0.0
          %327 = vmatpush.msra.mxu0 0.0
          %328 = vmatpush.msra.mxu0 0.0
          %329 = vmatpush.msra.mxu0 0.0
          %330 = vmatpush.msra.mxu0 0.0
          %331 = vmatpush.msra.mxu0 0.0
          %332 = vmatpush.msra.mxu0 0.0
          %333 = vmatpush.msra.mxu0 0.0
          %334 = vmatpush.msra.mxu0 0.0
          %335 = vmatpush.msra.mxu0 0.0
          %336 = vmatpush.msra.mxu0 0.0
          %337 = vmatpush.msra.mxu0 0.0
          %338 = vmatpush.msra.mxu0 0.0
          %339 = vmatpush.msra.mxu0 %v317
          %340 = vmatmul.f32.gmra.mxu0 %v322
          %v341 = vpop.f32.mrf.mxu0
          %v342 = vadd.f32 %v319, %v341
          %343 = vdwg.mxu0
          %vm344 = vcmask 1024
          %v345 = vsel %vm344, %v342, -inf
          %v346 = vrot.slane %v345, 4
          %v347 = vmax.f32 %v345, %v346
          %v348 = vrot.slane %v347, 2
          %v349 = vmax.f32 %v347, %v348
          %v350 = vrot.slane %v349, 1
          %v351 = vmax.f32 %v349, %v350
          %v352 = vsub.f32 %v342, %v351
          %v353 = vmul.f32 %v352, 1.442695
          %v354 = vpow.pop %v353
          %v355 = vsel %vm344, %v354, 0.0
          %v356 = vrot.slane %v355, 4
          %v357 = vadd.f32 %v355, %v356
          %v358 = vrot.slane %v357, 2
          %v359 = vadd.f32 %v357, %v358
          %v360 = vrot.slane %v359, 1
          %v361 = vadd.f32 %v359, %v360
          %v362 = vrcp.pop %v361
          %v363 = vmul.f32 %v361, %v362
          %v364 = vsub.f32 1.0, %v363
          %v365 = vmul.f32 %v362, %v364
          %v366 = vadd.f32 %v362, %v365
          %vm367 = vweird.f32 %v361
          %vm368 = vweird.f32 %v362
          %vm369 = vmor %vm367, %vm368
          %v370 = vsel %vm369, %v362, %v366
          %v371 = vand.u32 2147483647, %v361
          %vm372 = vcmp.eq.f32.partialorder %v371, 8.507059e+37
          %v373 = vand.u32 %v361, 2147483648
          %v374 = vor.u32 1.1754944e-38, %v373
          %v375 = vsel %vm372, %v374, %v370
          %v376 = vmul.f32 %v354, %v375
          %v377 = vld [vmem:[%s3] sm:$0xff]
          %vm378 = vcmask 15360
          %v380 = vsel %vm378, %v377, 0
          %vm382 = vcmask 1041408
          %v384 = vsel %vm382, %v376, 0
          %386 = vmatpush.msra.mxu0 0.0
          %387 = vmatpush.msra.mxu0 0.0
          %388 = vmatpush.msra.mxu0 0.0
          %389 = vmatpush.msra.mxu0 0.0
          %390 = vmatpush.msra.mxu0 0.0
          %391 = vmatpush.msra.mxu0 0.0
          %392 = vmatpush.msra.mxu0 0.0
          %393 = vmatpush.msra.mxu0 0.0
          %394 = vmatpush.msra.mxu0 0.0
          %395 = vmatpush.msra.mxu0 0.0
          %396 = vmatpush.msra.mxu0 0.0
          %397 = vmatpush.msra.mxu0 0.0
          %398 = vmatpush.msra.mxu0 0.0
          %399 = vmatpush.msra.mxu0 0.0
          %400 = vmatpush.msra.mxu0 0.0
          %401 = vmatpush.msra.mxu0 %v384
          %402 = vmatmul.f32.gmra.mxu0 %v380
          %v403 = vpop.f32.mrf.mxu0
          %v404 = vadd.f32 0.0, %v403
          %405 = vdwg.mxu0
          %406 = vst.msk [vmem:[%s292] sm:$0xff] %vm311, %v404
          %v407 = vld [vmem:[%s4] sm:$0x3]
          %v408 = vmul.f32 %v376, %v407
          %v409 = vsel %vm344, %v408, 0.0
          %v410 = vrot.slane %v409, 4
          %v411 = vadd.f32 %v409, %v410
          %v412 = vrot.slane %v411, 2
          %v413 = vadd.f32 %v411, %v412
          %v414 = vrot.slane %v413, 1
          %v415 = vadd.f32 %v413, %v414
          %vm416 = vcmask 0
          %417 = vst.msk [vmem:[%s295] sm:$0x1] %vm416, %v415
        $region52: #{tpu_custom_call.1} parent=39 // pred_fallthru
          _
        %p418 = scmp.lt.s32.totalorder %s25, 1
        %s419 = scalar_select %p418, %s25, 1
        %s420 = smul.addr %s419, 8
        %s421 = scalar_lea.vmem %s5, %s420
        %p422 = scmp.lt.s32.totalorder %s25, 1
        %s423 = scalar_select %p422, %s25, 1
        %s424 = scalar_lea.vmem %s6, %s423
        // Predicated region
        $region53: #{tpu_custom_call.1} parent=39 // pred_check
          %p425 = pneg %p163
        $region54: #{tpu_custom_call.1} parent=39 // pred_check_branch
          %427 = sbr.rel (%p425) target = $region56
        $region55: #{tpu_custom_call.1} parent=39 // pred_region
          _
        $region56: #{tpu_custom_call.1} parent=39 // pred_fallthru
          _
        // Predicated region
        $region57: #{tpu_custom_call.1} parent=39 // pred_check
          %p428 = pneg %p189
        $region58: #{tpu_custom_call.1} parent=39 // pred_check_branch
          %430 = sbr.rel (%p428) target = $region60
        $region59: #{tpu_custom_call.1} parent=39 // pred_region
          _
        $region60: #{tpu_custom_call.1} parent=39 // pred_fallthru
          _
      $region40: #{tpu_custom_call.1} parent=5 // pred_fallthru
        _
      %p431 = scmp.le.s32.totalorder 2, %s16
      // Predicated region
      $region61: #{tpu_custom_call.1} parent=5 // pred_check
        %p432 = pneg %p431
      $region62: #{tpu_custom_call.1} parent=5 // pred_check_branch
        %434 = sbr.rel (%p432) target = $region64
      $region63: #{tpu_custom_call.1} parent=5 // pred_region
        %s435 = ssub.s32 %s16, 2
        // Predicated region
        $region65: #{tpu_custom_call.1} parent=63 // pred_check
          %p436 = pneg %p169
        $region66: #{tpu_custom_call.1} parent=63 // pred_check_branch
          %438 = sbr.rel (%p436) target = $region68
        $region67: #{tpu_custom_call.1} parent=63 // pred_region
          %p439 = scmp.lt.s32.totalorder %s27, 1
          %s440 = scalar_select %p439, %s27, 1
          %s441 = smul.addr %s440, 8
          %s442 = scalar_lea.vmem %s5, %s441
        $region68: #{tpu_custom_call.1} parent=63 // pred_fallthru
          _
        // Predicated region
        $region69: #{tpu_custom_call.1} parent=63 // pred_check
          %p443 = pneg %p195
        $region70: #{tpu_custom_call.1} parent=63 // pred_check_branch
          %445 = sbr.rel (%p443) target = $region72
        $region71: #{tpu_custom_call.1} parent=63 // pred_region
          %p446 = scmp.lt.s32.totalorder %s27, 1
          %s447 = scalar_select %p446, %s27, 1
          %s448 = scalar_lea.vmem %s6, %s447
        $region72: #{tpu_custom_call.1} parent=63 // pred_fallthru
          _
      $region64: #{tpu_custom_call.1} parent=5 // pred_fallthru
        _
    $region6: #{tpu_custom_call.1} parent=1 // loop_footer
      %s20 = sadd.s32 1, %s16
    $region7: #{tpu_custom_call.1} parent=1 // loop_footer_branch
      %15 = sbr.rel target = $region3
    $region8: #{tpu_custom_call.1} parent=1 // loop_exit
      _
    %449 = vsyncpa [#allocation4], 1
    %s450 = scalar_lea.sflag [#allocation4], 1
    %451 = vsyncpa %s450, 1

</llo_original>
